<compile_context>
chip_gen: v6e
topology: v6e:2x2x1
jax: 0.10.0
libtpu: 0.0.40
codegen_flags: <defaults>
</compile_context>

<pallas_src>
import functools

import jax
import jax.numpy as jnp
from jax.experimental import pallas as pl
from jax.experimental.pallas import tpu as pltpu


def _round_up(x, m):
    return ((x + m - 1) // m) * m


def mlp_kernel(xT_ref, p_ref, oT_ref, *, in_features, hidden, hidden2):
    IN, H1, H2 = in_features, hidden, hidden2

    # Unpack the single resident parameter block (static, sub-vreg slices).
    p = p_ref[...]                                      # (H1, IN + H1 + 4) f32
    w1 = p[:, :IN]                                      # (H1, IN)
    b1 = p[:, IN:IN + 1]                                # (H1, 1)
    w2 = p[:H2, IN + 1:IN + 1 + H1]                     # (H2, H1)
    b2 = p[:H2, IN + 1 + H1:IN + 2 + H1]                # (H2, 1)
    w3 = p[:H2, IN + 2 + H1:IN + 3 + H1]                # (H2, 1)
    b3 = p[:1, IN + 3 + H1:IN + 4 + H1]                 # (1, 1)

    xT = xT_ref[...]                                    # (IN, TILE_B) f32

    # Layer 1: Linear + ReLU   -> h1^T : (H1, TILE_B), lane-dense
    h1 = jnp.dot(w1, xT, preferred_element_type=jnp.float32)
    h1 = jnp.maximum(h1 + b1, 0.0)
    # TODO(synk): Dropout omitted (identity at inference/eval time).

    # Layer 2: Linear + ReLU   -> h2^T : (H2, TILE_B), lane-dense
    h2 = jnp.dot(w2, h1, preferred_element_type=jnp.float32)
    h2 = jnp.maximum(h2 + b2, 0.0)

    # Layer 3: Linear(H2 -> 1) as broadcast-multiply + sublane reduce; result
    # is already in the lane-dense (1, TILE_B) output layout.
    oT_ref[...] = jnp.sum(h2 * w3, axis=0, keepdims=True) + b3


def _pack_params(params, in_features, hidden, hidden2):
    """Pack w1,b1,w2,b2,w3,b3 (PyTorch (out,in)/(out,) layout) into one block."""
    w1, b1, w2, b2, w3, b3 = params
    cols = in_features + hidden + 4
    p = jnp.zeros((hidden, cols), jnp.float32)
    p = p.at[:, :in_features].set(w1.astype(jnp.float32))
    p = p.at[:, in_features].set(b1.astype(jnp.float32))
    p = p.at[:hidden2, in_features + 1:in_features + 1 + hidden].set(
        w2.astype(jnp.float32))
    p = p.at[:hidden2, in_features + 1 + hidden].set(b2.astype(jnp.float32))
    p = p.at[:hidden2, in_features + 2 + hidden].set(w3[0].astype(jnp.float32))
    p = p.at[0, in_features + 3 + hidden].set(b3[0].astype(jnp.float32))
    return p


def neural_net_regressor(x, params, *, max_tile_b=8192):
    """Fused forward pass.  x: [B, input_size] -> [B, 1] float32."""
    w1, b1, w2, b2, w3, b3 = params
    B, in_features = x.shape
    hidden = w1.shape[0]
    hidden2 = w2.shape[0]

    # Batch tiling: one tile for small/medium B, else an even number of
    # 128-aligned tiles (balanced across v7x's two TensorCores).
    max_tile_b = max(128, _round_up(max_tile_b, 128))
    b128 = _round_up(B, 128)
    if b128 <= max_tile_b:
        num_tiles, tile_b = 1, b128
    else:
        num_tiles = pl.cdiv(b128, max_tile_b)
        num_tiles += num_tiles % 2                      # even count for v7x
        tile_b = _round_up(pl.cdiv(B, num_tiles), 128)
    b_pad = num_tiles * tile_b

    xT = x.astype(jnp.float32).T                        # (IN, B): batch on lanes
    if b_pad != B:
        xT = jnp.pad(xT, ((0, 0), (0, b_pad - B)))

    p = _pack_params(params, in_features, hidden, hidden2)

    kernel = functools.partial(
        mlp_kernel, in_features=in_features, hidden=hidden, hidden2=hidden2)

    outT = pl.pallas_call(
        kernel,
        out_shape=jax.ShapeDtypeStruct((1, b_pad), jnp.float32),
        grid=(num_tiles,),
        in_specs=[
            pl.BlockSpec((in_features, tile_b), lambda i: (0, i)),  # x stream
            pl.BlockSpec(p.shape, lambda i: (0, 0)),    # params: resident, 1 DMA
        ],
        out_specs=pl.BlockSpec((1, tile_b), lambda i: (0, i)),      # lane-dense
        compiler_params=pltpu.CompilerParams(
            dimension_semantics=("parallel",),
            vmem_limit_bytes=32 * 1024 * 1024,
        ),
    )(xT, p)

    return outT.reshape(-1)[:B].reshape(B, 1)


def init_params(key, input_size, hidden_size=16):
    """PyTorch nn.Linear-style init; weights kept as (out_features, in_features)."""
    h2 = hidden_size // 2
    ks = jax.random.split(key, 6)

    def linear(kw, kb, fan_in, fan_out):
        bound = 1.0 / jnp.sqrt(float(fan_in))
        w = jax.random.uniform(kw, (fan_out, fan_in), jnp.float32, -bound, bound)
        b = jax.random.uniform(kb, (fan_out,), jnp.float32, -bound, bound)
        return w, b

    w1, b1 = linear(ks[0], ks[1], input_size, hidden_size)
    w2, b2 = linear(ks[2], ks[3], hidden_size, h2)
    w3, b3 = linear(ks[4], ks[5], h2, 1)
    return (w1, b1, w2, b2, w3, b3)


if __name__ == "__main__":
    key = jax.random.PRNGKey(0)
    k_x, k_p = jax.random.split(key)

    batch = 1000            # not a multiple of 128: exercises the padding path
    input_size = 32
    hidden_size = 16

    x = jax.random.normal(k_x, (batch, input_size), dtype=jnp.float32)
    params = init_params(k_p, input_size, hidden_size)

    out = neural_net_regressor(x, params)
    out = jax.block_until_ready(out)
    assert out.shape == (batch, 1)

    # Pure-JAX f32 reference (same math as the PyTorch module in eval mode).
    w1, b1, w2, b2, w3, b3 = params
    hp = jax.lax.Precision.HIGHEST
    h1 = jnp.maximum(jnp.dot(x, w1.T, precision=hp) + b1, 0.0)
    h2 = jnp.maximum(jnp.dot(h1, w2.T, precision=hp) + b2, 0.0)
    ref = jnp.dot(h2, w3.T, precision=hp) + b3

    err = float(jnp.max(jnp.abs(out - ref)))
    assert jnp.allclose(out, ref, atol=5e-4, rtol=5e-4), err

    print("KERNEL_OK")
</pallas_src>

<mosaic_0001>
module attributes {stable_mosaic.version = 11 : i64} {
  func.func @mlp_kernel(%arg0: i32, %arg1: memref<32x1024xf32, #tpu.memory_space<vmem>>, %arg2: memref<16x52xf32, #tpu.memory_space<vmem>>, %arg3: memref<1x1024xf32, #tpu.memory_space<vmem>>) attributes {dimension_semantics = [#tpu.dimension_semantics<parallel>], iteration_bounds = array<i64: 1>, scalar_prefetch = 0 : i64, scratch_operands = 0 : i64, tpu.core_type = #tpu.core_type<tc>, window_params = [{transform_indices = @transform_0, window_bounds = array<i64: 32, 1024>}, {pipeline_mode = #tpu.pipeline_mode<synchronous>, transform_indices = @transform_1, window_bounds = array<i64: 16, 52>}, {transform_indices = @transform_2, window_bounds = array<i64: 1, 1024>}]} {
    %c0 = arith.constant 0 : index
    %c0_0 = arith.constant 0 : index
    %0 = vector.load %arg2[%c0, %c0_0] : memref<16x52xf32, #tpu.memory_space<vmem>>, vector<16x52xf32>
    %1 = vector.extract_strided_slice %0 {offsets = [0, 0], sizes = [16, 32], strides = [1, 1]} : vector<16x52xf32> to vector<16x32xf32>
    %2 = vector.extract_strided_slice %0 {offsets = [0, 32], sizes = [16, 1], strides = [1, 1]} : vector<16x52xf32> to vector<16x1xf32>
    %3 = vector.extract_strided_slice %0 {offsets = [0, 33], sizes = [8, 16], strides = [1, 1]} : vector<16x52xf32> to vector<8x16xf32>
    %4 = vector.extract_strided_slice %0 {offsets = [0, 49], sizes = [8, 1], strides = [1, 1]} : vector<16x52xf32> to vector<8x1xf32>
    %5 = vector.extract_strided_slice %0 {offsets = [0, 50], sizes = [8, 1], strides = [1, 1]} : vector<16x52xf32> to vector<8x1xf32>
    %6 = vector.extract_strided_slice %0 {offsets = [0, 51], sizes = [1, 1], strides = [1, 1]} : vector<16x52xf32> to vector<1x1xf32>
    %c0_1 = arith.constant 0 : index
    %c0_2 = arith.constant 0 : index
    %7 = vector.load %arg1[%c0_1, %c0_2] : memref<32x1024xf32, #tpu.memory_space<vmem>>, vector<32x1024xf32>
    %cst = arith.constant dense<0.000000e+00> : vector<16x1024xf32>
    %8 = tpu.matmul %1, %7, %cst {dimension_numbers = #tpu.dot_dimension_numbers<[1], [0], [0], [1], [0, 0, 1, 1], [], []>} : vector<16x32xf32>, vector<32x1024xf32>, vector<16x1024xf32> -> vector<16x1024xf32>
    %9 = vector.broadcast %2 : vector<16x1xf32> to vector<16x1024xf32>
    %10 = arith.addf %8, %9 : vector<16x1024xf32>
    %cst_3 = arith.constant 0.000000e+00 : f32
    %11 = vector.broadcast %cst_3 : f32 to vector<16x1024xf32>
    %12 = arith.maximumf %10, %11 : vector<16x1024xf32>
    %cst_4 = arith.constant dense<0.000000e+00> : vector<8x1024xf32>
    %13 = tpu.matmul %3, %12, %cst_4 {dimension_numbers = #tpu.dot_dimension_numbers<[1], [0], [0], [1], [0, 0, 1, 1], [], []>} : vector<8x16xf32>, vector<16x1024xf32>, vector<8x1024xf32> -> vector<8x1024xf32>
    %14 = vector.broadcast %4 : vector<8x1xf32> to vector<8x1024xf32>
    %15 = arith.addf %13, %14 : vector<8x1024xf32>
    %cst_5 = arith.constant 0.000000e+00 : f32
    %16 = vector.broadcast %cst_5 : f32 to vector<8x1024xf32>
    %17 = arith.maximumf %15, %16 : vector<8x1024xf32>
    %18 = vector.broadcast %5 : vector<8x1xf32> to vector<8x1024xf32>
    %19 = arith.mulf %17, %18 : vector<8x1024xf32>
    %cst_6 = arith.constant dense<0.000000e+00> : vector<1024xf32>
    %20 = vector.multi_reduction <add>, %19, %cst_6 [0] : vector<8x1024xf32> to vector<1024xf32>
    %21 = vector.shape_cast %20 : vector<1024xf32> to vector<1x1024xf32>
    %22 = vector.broadcast %6 : vector<1x1xf32> to vector<1x1024xf32>
    %23 = arith.addf %21, %22 : vector<1x1024xf32>
    %c0_7 = arith.constant 0 : index
    %c0_8 = arith.constant 0 : index
    %24 = vector.load %arg3[%c0_7, %c0_8] : memref<1x1024xf32, #tpu.memory_space<vmem>>, vector<1x1024xf32>
    tpu.vector_store %arg3[%c0_7, %c0_8], %23 {strides = array<i32>} : memref<1x1024xf32, #tpu.memory_space<vmem>>, vector<1x1024xf32>,
    return
  }
  func.func @transform_0(%arg0: i32) -> (i32, i32) {
    %c0_i32 = arith.constant 0 : i32
    %c0_i32_0 = arith.constant 0 : i32
    return %c0_i32, %arg0 : i32, i32
  }
  func.func @transform_1(%arg0: i32) -> (i32, i32) {
    %c0_i32 = arith.constant 0 : i32
    %c0_i32_0 = arith.constant 0 : i32
    %c0_i32_1 = arith.constant 0 : i32
    return %c0_i32, %c0_i32_0 : i32, i32
  }
  func.func @transform_2(%arg0: i32) -> (i32, i32) {
    %c0_i32 = arith.constant 0 : i32
    %c0_i32_0 = arith.constant 0 : i32
    return %c0_i32, %arg0 : i32, i32
  }
}

</mosaic_0001>

<llo_original>
// kernel: tpu_custom_call.1
$region0: #{tpu_custom_call.1}
  #allocation0 [shape = 'u32[]', space=smem, size = 0x4, offset = 0x4, fixed_abs, tag = 'smem constant byte address 0x4 - core index']
  #allocation1 [shape = 'u32[144,128]{1,0:T(1,128)}', space=vmem, size = 0x12000, scoped, tag = 'internal scratch']
  %s0 = inlined_call_operand.hbm [shape: f32[32,1024], index: 0, kind: input, shape index: {}]
  %s1 = inlined_call_operand.hbm [shape: f32[16,52], index: 1, kind: input, shape index: {}]
  %s2 = inlined_call_operand.hbm [shape: f32[1,1024], index: 2, kind: output, shape index: {}]
  %s3 = sld [smem:[#allocation0]]
  $region26: #{tpu_custom_call.1} parent=0
    _
  %s5 = ssub.s32 1, %s3
  %s6 = scalar_select 0, %s5, %s3
  $region1: #{tpu_custom_call.1} parent=0
    #allocation2 [shape = 'u8[131072]{0}', space=vmem, size = 0x20000, scoped, tag = 'input window, operand 0, single buffered']
    #allocation3 [shape = 's32[1]{0}', space=sflag, size = 0x4, scoped, tag = 'scoped memory for tpu_custom_call.1']
    #allocation4 [shape = 's32[1]{0}', space=sflag, size = 0x4, scoped, tag = 'scoped memory for tpu_custom_call.1']
    #allocation5 [shape = 'u8[8192]{0}', space=vmem, size = 0x2000, scoped, tag = 'input window, operand 1, single buffered']
    #allocation6 [shape = 's32[1]{0}', space=sflag, size = 0x4, scoped, tag = 'scoped memory for tpu_custom_call.1']
    #allocation7 [shape = 'u8[4096]{0}', space=vmem, size = 0x1000, scoped, tag = 'output window, operand 0, single buffered']
    %7 = vsyncpa [#allocation3], 0
    %8 = vsyncpa [#allocation6], 0
    %9 = vsyncpa [#allocation4], 0
    // Predicated region
    $region2: #{tpu_custom_call.1} parent=1 // pred_check
      _
    $region3: #{tpu_custom_call.1} parent=1 // pred_check_branch
      %11 = sbr.rel (0) target = $region5
    $region4: #{tpu_custom_call.1} parent=1 // pred_region
      %s13 = ssub.s32 4096, 4096
      %14 = vsyncadd [#allocation3], %s13
      %s15 = sshll.u32 [#allocation2], 4
      %s16 = int_to_ptr.vmem [resolvable:$true] %s15
      %21 = dma.hbm_to_vmem [thread:$0]  %s0, 4096, %s16, [#allocation3], 1024, 1024, 64
    $region5: #{tpu_custom_call.1} parent=1 // pred_fallthru
      _
    // Predicated region
    $region6: #{tpu_custom_call.1} parent=1 // pred_check
      _
    $region7: #{tpu_custom_call.1} parent=1 // pred_check_branch
      %23 = sbr.rel (0) target = $region9
    $region8: #{tpu_custom_call.1} parent=1 // pred_region
      %s25 = ssub.s32 256, 256
      %26 = vsyncadd [#allocation6], %s25
      %s27 = sshll.u32 [#allocation5], 4
      %s28 = int_to_ptr.vmem [resolvable:$true] %s27
      %33 = dma.hbm_to_vmem [thread:$0]  %s1, 256, %s28, [#allocation6], 128, 128, 8
    $region9: #{tpu_custom_call.1} parent=1 // pred_fallthru
      _
    // Predicated region
    $region10: #{tpu_custom_call.1} parent=1 // pred_check
      _
    $region11: #{tpu_custom_call.1} parent=1 // pred_check_branch
      %35 = sbr.rel (0) target = $region13
    $region12: #{tpu_custom_call.1} parent=1 // pred_region
      %36 = dma.done [#allocation3], 4096
    $region13: #{tpu_custom_call.1} parent=1 // pred_fallthru
      _
    // Predicated region
    $region14: #{tpu_custom_call.1} parent=1 // pred_check
      _
    $region15: #{tpu_custom_call.1} parent=1 // pred_check_branch
      %38 = sbr.rel (0) target = $region17
    $region16: #{tpu_custom_call.1} parent=1 // pred_region
      %39 = dma.done [#allocation6], 256
    $region17: #{tpu_custom_call.1} parent=1 // pred_fallthru
      _
    %v40 = vld [vmem:[#allocation5] sm:$0xff]
    %v41 = vld [vmem:[#allocation5 + $0x8] sm:$0xff]
    %v42 = vld [vmem:[#allocation2] sm:$0xff]
    %v43 = vld [vmem:[#allocation2 + $0x8] sm:$0xff]
    %v44 = vld [vmem:[#allocation2 + $0x10] sm:$0xff]
    %v45 = vld [vmem:[#allocation2 + $0x18] sm:$0xff]
    %v46 = vld [vmem:[#allocation2 + $0x20] sm:$0xff]
    %v47 = vld [vmem:[#allocation2 + $0x28] sm:$0xff]
    %v48 = vld [vmem:[#allocation2 + $0x30] sm:$0xff]
    %v49 = vld [vmem:[#allocation2 + $0x38] sm:$0xff]
    %v50 = vld [vmem:[#allocation2 + $0x40] sm:$0xff]
    %v51 = vld [vmem:[#allocation2 + $0x48] sm:$0xff]
    %v52 = vld [vmem:[#allocation2 + $0x50] sm:$0xff]
    %v53 = vld [vmem:[#allocation2 + $0x58] sm:$0xff]
    %v54 = vld [vmem:[#allocation2 + $0x60] sm:$0xff]
    %v55 = vld [vmem:[#allocation2 + $0x68] sm:$0xff]
    %v56 = vld [vmem:[#allocation2 + $0x70] sm:$0xff]
    %v57 = vld [vmem:[#allocation2 + $0x78] sm:$0xff]
    %v58 = vld [vmem:[#allocation2 + $0x80] sm:$0xff]
    %v59 = vld [vmem:[#allocation2 + $0x88] sm:$0xff]
    %v60 = vld [vmem:[#allocation2 + $0x90] sm:$0xff]
    %v61 = vld [vmem:[#allocation2 + $0x98] sm:$0xff]
    %v62 = vld [vmem:[#allocation2 + $0xa0] sm:$0xff]
    %v63 = vld [vmem:[#allocation2 + $0xa8] sm:$0xff]
    %v64 = vld [vmem:[#allocation2 + $0xb0] sm:$0xff]
    %v65 = vld [vmem:[#allocation2 + $0xb8] sm:$0xff]
    %v66 = vld [vmem:[#allocation2 + $0xc0] sm:$0xff]
    %v67 = vld [vmem:[#allocation2 + $0xc8] sm:$0xff]
    %v68 = vld [vmem:[#allocation2 + $0xd0] sm:$0xff]
    %v69 = vld [vmem:[#allocation2 + $0xd8] sm:$0xff]
    %v70 = vld [vmem:[#allocation2 + $0xe0] sm:$0xff]
    %v71 = vld [vmem:[#allocation2 + $0xe8] sm:$0xff]
    %v72 = vld [vmem:[#allocation2 + $0xf0] sm:$0xff]
    %v73 = vld [vmem:[#allocation2 + $0xf8] sm:$0xff]
    %75 = vset.pattern.permute.xlu0 32
    %76 = vperm.xlu0 %75, %v40
    %v77 = vpop.permute.xlu0 %76
    %80 = vset.pattern.permute.xlu0 32
    %81 = vperm.xlu0 %80, %v41
    %v82 = vpop.permute.xlu0 %81
    %vm84 = vcmask 261120
    %v85 = vsel %vm84, %v40, 0
    %v87 = vsel %vm84, %v41, 0
    %89 = vmatprep.subr.mxu0 0.0
    %90 = vmatpush1.msra.mxu0 0.0
    %91 = vmatprep.subr.mxu0 0.0
    %92 = vmatpush1.msra.mxu0 0.0
    %93 = vmatprep.subr.mxu0 0.0
    %94 = vmatpush1.msra.mxu0 0.0
    %95 = vmatprep.subr.mxu0 0.0
    %96 = vmatpush1.msra.mxu0 0.0
    %97 = vmatprep.subr.mxu0 0.0
    %98 = vmatpush1.msra.mxu0 0.0
    %99 = vmatprep.subr.mxu0 0.0
    %100 = vmatpush1.msra.mxu0 0.0
    %101 = vmatprep.subr.mxu0 0.0
    %102 = vmatpush1.msra.mxu0 0.0
    %103 = vmatprep.subr.mxu0 0.0
    %104 = vmatpush1.msra.mxu0 0.0
    %105 = vmatprep.subr.mxu0 0.0
    %106 = vmatpush1.msra.mxu0 0.0
    %107 = vmatprep.subr.mxu0 0.0
    %108 = vmatpush1.msra.mxu0 0.0
    %109 = vmatprep.subr.mxu0 0.0
    %110 = vmatpush1.msra.mxu0 0.0
    %111 = vmatprep.subr.mxu0 0.0
    %112 = vmatpush1.msra.mxu0 0.0
    %113 = vmatprep.subr.mxu0 %v67
    %114 = vmatpush1.msra.mxu0 %v66
    %115 = vmatprep.subr.mxu0 %v59
    %116 = vmatpush1.msra.mxu0 %v58
    %117 = vmatprep.subr.mxu0 %v51
    %118 = vmatpush1.msra.mxu0 %v50
    %119 = vmatprep.subr.mxu0 %v43
    %120 = vmatpush1.msra.mxu0 %v42
    %121 = vmatprep.subr.mxu0 0.0
    %122 = vmatpush2.msra.mxu0 0.0
    %123 = vmatprep.subr.mxu0 0.0
    %124 = vmatpush2.msra.mxu0 0.0
    %125 = vmatprep.subr.mxu0 0.0
    %126 = vmatpush2.msra.mxu0 0.0
    %127 = vmatprep.subr.mxu0 0.0
    %128 = vmatpush2.msra.mxu0 0.0
    %129 = vmatprep.subr.mxu0 0.0
    %130 = vmatpush2.msra.mxu0 0.0
    %131 = vmatprep.subr.mxu0 0.0
    %132 = vmatpush2.msra.mxu0 0.0
    %133 = vmatprep.subr.mxu0 0.0
    %134 = vmatpush2.msra.mxu0 0.0
    %135 = vmatprep.subr.mxu0 0.0
    %136 = vmatpush2.msra.mxu0 0.0
    %137 = vmatprep.subr.mxu0 0.0
    %138 = vmatpush2.msra.mxu0 0.0
    %139 = vmatprep.subr.mxu0 0.0
    %140 = vmatpush2.msra.mxu0 0.0
    %141 = vmatprep.subr.mxu0 0.0
    %142 = vmatpush2.msra.mxu0 0.0
    %143 = vmatprep.subr.mxu0 0.0
    %144 = vmatpush2.msra.mxu0 0.0
    %145 = vmatprep.subr.mxu0 0.0
    %146 = vmatpush2.msra.mxu0 0.0
    %147 = vmatprep.subr.mxu0 0.0
    %148 = vmatpush2.msra.mxu0 0.0
    %149 = vmatprep.subr.mxu0 0.0
    %150 = vmatpush2.msra.mxu0 0.0
    %151 = vmatprep.subr.mxu0 0.0
    %152 = vmatpush2.msra.mxu0 0.0
    %153 = vmatprep.mubr.f32.mxu0 0.0
    %154 = vmatmul.mubr.f32.gmra.mxu0 %v85
    %v155 = vpop.f32.mrf.mxu0
    %v156 = vadd.f32 %v77, %v155
    %v157 = vpop.f32.mrf.mxu0
    %v158 = vadd.f32 %v77, %v157
    %159 = vmatprep.mubr.f32.mxu0 0.0
    %160 = vmatmul.mubr.f32.gmra.mxu0 %v87
    %v161 = vpop.f32.mrf.mxu0
    %v162 = vadd.f32 %v82, %v161
    %v163 = vpop.f32.mrf.mxu0
    %v164 = vadd.f32 %v82, %v163
    %165 = vdwg.mxu0
    %166 = vmatprep.subr.mxu0 0.0
    %167 = vmatpush1.msra.mxu0 0.0
    %168 = vmatprep.subr.mxu0 0.0
    %169 = vmatpush1.msra.mxu0 0.0
    %170 = vmatprep.subr.mxu0 0.0
    %171 = vmatpush1.msra.mxu0 0.0
    %172 = vmatprep.subr.mxu0 0.0
    %173 = vmatpush1.msra.mxu0 0.0
    %174 = vmatprep.subr.mxu0 0.0
    %175 = vmatpush1.msra.mxu0 0.0
    %176 = vmatprep.subr.mxu0 0.0
    %177 = vmatpush1.msra.mxu0 0.0
    %178 = vmatprep.subr.mxu0 0.0
    %179 = vmatpush1.msra.mxu0 0.0
    %180 = vmatprep.subr.mxu0 0.0
    %181 = vmatpush1.msra.mxu0 0.0
    %182 = vmatprep.subr.mxu0 0.0
    %183 = vmatpush1.msra.mxu0 0.0
    %184 = vmatprep.subr.mxu0 0.0
    %185 = vmatpush1.msra.mxu0 0.0
    %186 = vmatprep.subr.mxu0 0.0
    %187 = vmatpush1.msra.mxu0 0.0
    %188 = vmatprep.subr.mxu0 0.0
    %189 = vmatpush1.msra.mxu0 0.0
    %190 = vmatprep.subr.mxu0 %v69
    %191 = vmatpush1.msra.mxu0 %v68
    %192 = vmatprep.subr.mxu0 %v61
    %193 = vmatpush1.msra.mxu0 %v60
    %194 = vmatprep.subr.mxu0 %v53
    %195 = vmatpush1.msra.mxu0 %v52
    %196 = vmatprep.subr.mxu0 %v45
    %197 = vmatpush1.msra.mxu0 %v44
    %198 = vmatprep.subr.mxu0 0.0
    %199 = vmatpush2.msra.mxu0 0.0
    %200 = vmatprep.subr.mxu0 0.0
    %201 = vmatpush2.msra.mxu0 0.0
    %202 = vmatprep.subr.mxu0 0.0
    %203 = vmatpush2.msra.mxu0 0.0
    %204 = vmatprep.subr.mxu0 0.0
    %205 = vmatpush2.msra.mxu0 0.0
    %206 = vmatprep.subr.mxu0 0.0
    %207 = vmatpush2.msra.mxu0 0.0
    %208 = vmatprep.subr.mxu0 0.0
    %209 = vmatpush2.msra.mxu0 0.0
    %210 = vmatprep.subr.mxu0 0.0
    %211 = vmatpush2.msra.mxu0 0.0
    %212 = vmatprep.subr.mxu0 0.0
    %213 = vmatpush2.msra.mxu0 0.0
    %214 = vmatprep.subr.mxu0 0.0
    %215 = vmatpush2.msra.mxu0 0.0
    %216 = vmatprep.subr.mxu0 0.0
    %217 = vmatpush2.msra.mxu0 0.0
    %218 = vmatprep.subr.mxu0 0.0
    %219 = vmatpush2.msra.mxu0 0.0
    %220 = vmatprep.subr.mxu0 0.0
    %221 = vmatpush2.msra.mxu0 0.0
    %222 = vmatprep.subr.mxu0 0.0
    %223 = vmatpush2.msra.mxu0 0.0
    %224 = vmatprep.subr.mxu0 0.0
    %225 = vmatpush2.msra.mxu0 0.0
    %226 = vmatprep.subr.mxu0 0.0
    %227 = vmatpush2.msra.mxu0 0.0
    %228 = vmatprep.subr.mxu0 0.0
    %229 = vmatpush2.msra.mxu0 0.0
    %230 = vmatprep.mubr.f32.mxu0 0.0
    %231 = vmatmul.mubr.f32.gmra.mxu0 %v85
    %v232 = vpop.f32.mrf.mxu0
    %v233 = vadd.f32 %v77, %v232
    %v234 = vpop.f32.mrf.mxu0
    %v235 = vadd.f32 %v77, %v234
    %236 = vmatprep.mubr.f32.mxu0 0.0
    %237 = vmatmul.mubr.f32.gmra.mxu0 %v87
    %v238 = vpop.f32.mrf.mxu0
    %v239 = vadd.f32 %v82, %v238
    %v240 = vpop.f32.mrf.mxu0
    %v241 = vadd.f32 %v82, %v240
    %242 = vdwg.mxu0
    %243 = vmatprep.subr.mxu0 0.0
    %244 = vmatpush1.msra.mxu0 0.0
    %245 = vmatprep.subr.mxu0 0.0
    %246 = vmatpush1.msra.mxu0 0.0
    %247 = vmatprep.subr.mxu0 0.0
    %248 = vmatpush1.msra.mxu0 0.0
    %249 = vmatprep.subr.mxu0 0.0
    %250 = vmatpush1.msra.mxu0 0.0
    %251 = vmatprep.subr.mxu0 0.0
    %252 = vmatpush1.msra.mxu0 0.0
    %253 = vmatprep.subr.mxu0 0.0
    %254 = vmatpush1.msra.mxu0 0.0
    %255 = vmatprep.subr.mxu0 0.0
    %256 = vmatpush1.msra.mxu0 0.0
    %257 = vmatprep.subr.mxu0 0.0
    %258 = vmatpush1.msra.mxu0 0.0
    %259 = vmatprep.subr.mxu0 0.0
    %260 = vmatpush1.msra.mxu0 0.0
    %261 = vmatprep.subr.mxu0 0.0
    %262 = vmatpush1.msra.mxu0 0.0
    %263 = vmatprep.subr.mxu0 0.0
    %264 = vmatpush1.msra.mxu0 0.0
    %265 = vmatprep.subr.mxu0 0.0
    %266 = vmatpush1.msra.mxu0 0.0
    %267 = vmatprep.subr.mxu0 %v71
    %268 = vmatpush1.msra.mxu0 %v70
    %269 = vmatprep.subr.mxu0 %v63
    %270 = vmatpush1.msra.mxu0 %v62
    %271 = vmatprep.subr.mxu0 %v55
    %272 = vmatpush1.msra.mxu0 %v54
    %273 = vmatprep.subr.mxu0 %v47
    %274 = vmatpush1.msra.mxu0 %v46
    %275 = vmatprep.subr.mxu0 0.0
    %276 = vmatpush2.msra.mxu0 0.0
    %277 = vmatprep.subr.mxu0 0.0
    %278 = vmatpush2.msra.mxu0 0.0
    %279 = vmatprep.subr.mxu0 0.0
    %280 = vmatpush2.msra.mxu0 0.0
    %281 = vmatprep.subr.mxu0 0.0
    %282 = vmatpush2.msra.mxu0 0.0
    %283 = vmatprep.subr.mxu0 0.0
    %284 = vmatpush2.msra.mxu0 0.0
    %285 = vmatprep.subr.mxu0 0.0
    %286 = vmatpush2.msra.mxu0 0.0
    %287 = vmatprep.subr.mxu0 0.0
    %288 = vmatpush2.msra.mxu0 0.0
    %289 = vmatprep.subr.mxu0 0.0
    %290 = vmatpush2.msra.mxu0 0.0
    %291 = vmatprep.subr.mxu0 0.0
    %292 = vmatpush2.msra.mxu0 0.0
    %293 = vmatprep.subr.mxu0 0.0
    %294 = vmatpush2.msra.mxu0 0.0
    %295 = vmatprep.subr.mxu0 0.0
    %296 = vmatpush2.msra.mxu0 0.0
    %297 = vmatprep.subr.mxu0 0.0
    %298 = vmatpush2.msra.mxu0 0.0
    %299 = vmatprep.subr.mxu0 0.0
    %300 = vmatpush2.msra.mxu0 0.0
    %301 = vmatprep.subr.mxu0 0.0
    %302 = vmatpush2.msra.mxu0 0.0
    %303 = vmatprep.subr.mxu0 0.0
    %304 = vmatpush2.msra.mxu0 0.0
    %305 = vmatprep.subr.mxu0 0.0
    %306 = vmatpush2.msra.mxu0 0.0
    %307 = vmatprep.mubr.f32.mxu0 0.0
    %308 = vmatmul.mubr.f32.gmra.mxu0 %v85
    %v309 = vpop.f32.mrf.mxu0
    %v310 = vadd.f32 %v77, %v309
    %v311 = vpop.f32.mrf.mxu0
    %v312 = vadd.f32 %v77, %v311
    %313 = vmatprep.mubr.f32.mxu0 0.0
    %314 = vmatmul.mubr.f32.gmra.mxu0 %v87
    %v315 = vpop.f32.mrf.mxu0
    %v316 = vadd.f32 %v82, %v315
    %v317 = vpop.f32.mrf.mxu0
    %v318 = vadd.f32 %v82, %v317
    %319 = vdwg.mxu0
    %320 = vmatprep.subr.mxu0 0.0
    %321 = vmatpush1.msra.mxu0 0.0
    %322 = vmatprep.subr.mxu0 0.0
    %323 = vmatpush1.msra.mxu0 0.0
    %324 = vmatprep.subr.mxu0 0.0
    %325 = vmatpush1.msra.mxu0 0.0
    %326 = vmatprep.subr.mxu0 0.0
    %327 = vmatpush1.msra.mxu0 0.0
    %328 = vmatprep.subr.mxu0 0.0
    %329 = vmatpush1.msra.mxu0 0.0
    %330 = vmatprep.subr.mxu0 0.0
    %331 = vmatpush1.msra.mxu0 0.0
    %332 = vmatprep.subr.mxu0 0.0
    %333 = vmatpush1.msra.mxu0 0.0
    %334 = vmatprep.subr.mxu0 0.0
    %335 = vmatpush1.msra.mxu0 0.0
    %336 = vmatprep.subr.mxu0 0.0
    %337 = vmatpush1.msra.mxu0 0.0
    %338 = vmatprep.subr.mxu0 0.0
    %339 = vmatpush1.msra.mxu0 0.0
    %340 = vmatprep.subr.mxu0 0.0
    %341 = vmatpush1.msra.mxu0 0.0
    %342 = vmatprep.subr.mxu0 0.0
    %343 = vmatpush1.msra.mxu0 0.0
    %344 = vmatprep.subr.mxu0 %v73
    %345 = vmatpush1.msra.mxu0 %v72
    %346 = vmatprep.subr.mxu0 %v65
    %347 = vmatpush1.msra.mxu0 %v64
    %348 = vmatprep.subr.mxu0 %v57
    %349 = vmatpush1.msra.mxu0 %v56
    %350 = vmatprep.subr.mxu0 %v49
    %351 = vmatpush1.msra.mxu0 %v48
    %352 = vmatprep.subr.mxu0 0.0
    %353 = vmatpush2.msra.mxu0 0.0
    %354 = vmatprep.subr.mxu0 0.0
    %355 = vmatpush2.msra.mxu0 0.0
    %356 = vmatprep.subr.mxu0 0.0
    %357 = vmatpush2.msra.mxu0 0.0
    %358 = vmatprep.subr.mxu0 0.0
    %359 = vmatpush2.msra.mxu0 0.0
    %360 = vmatprep.subr.mxu0 0.0
    %361 = vmatpush2.msra.mxu0 0.0
    %362 = vmatprep.subr.mxu0 0.0
    %363 = vmatpush2.msra.mxu0 0.0
    %364 = vmatprep.subr.mxu0 0.0
    %365 = vmatpush2.msra.mxu0 0.0
    %366 = vmatprep.subr.mxu0 0.0
    %367 = vmatpush2.msra.mxu0 0.0
    %368 = vmatprep.subr.mxu0 0.0
    %369 = vmatpush2.msra.mxu0 0.0
    %370 = vmatprep.subr.mxu0 0.0
    %371 = vmatpush2.msra.mxu0 0.0
    %372 = vmatprep.subr.mxu0 0.0
    %373 = vmatpush2.msra.mxu0 0.0
    %374 = vmatprep.subr.mxu0 0.0
    %375 = vmatpush2.msra.mxu0 0.0
    %376 = vmatprep.subr.mxu0 0.0
    %377 = vmatpush2.msra.mxu0 0.0
    %378 = vmatprep.subr.mxu0 0.0
    %379 = vmatpush2.msra.mxu0 0.0
    %380 = vmatprep.subr.mxu0 0.0
    %381 = vmatpush2.msra.mxu0 0.0
    %382 = vmatprep.subr.mxu0 0.0
    %383 = vmatpush2.msra.mxu0 0.0
    %384 = vmatprep.mubr.f32.mxu0 0.0
    %385 = vmatmul.mubr.f32.gmra.mxu0 %v85
    %v386 = vpop.f32.mrf.mxu0
    %v387 = vadd.f32 %v77, %v386
    %v388 = vpop.f32.mrf.mxu0
    %v389 = vadd.f32 %v77, %v388
    %390 = vmatprep.mubr.f32.mxu0 0.0
    %391 = vmatmul.mubr.f32.gmra.mxu0 %v87
    %v392 = vpop.f32.mrf.mxu0
    %v393 = vadd.f32 %v82, %v392
    %v394 = vpop.f32.mrf.mxu0
    %v395 = vadd.f32 %v82, %v394
    %396 = vdwg.mxu0
    %v397 = vmax.f32 %v156, 0.0
    %v398 = vmax.f32 %v158, 0.0
    %v399 = vmax.f32 %v233, 0.0
    %v400 = vmax.f32 %v235, 0.0
    %v401 = vmax.f32 %v310, 0.0
    %v402 = vmax.f32 %v312, 0.0
    %v403 = vmax.f32 %v387, 0.0
    %v404 = vmax.f32 %v389, 0.0
    %v405 = vmax.f32 %v162, 0.0
    %v406 = vmax.f32 %v164, 0.0
    %v407 = vmax.f32 %v239, 0.0
    %v408 = vmax.f32 %v241, 0.0
    %v409 = vmax.f32 %v316, 0.0
    %v410 = vmax.f32 %v318, 0.0
    %v411 = vmax.f32 %v393, 0.0
    %v412 = vmax.f32 %v395, 0.0
    %413 = vset.pattern.permute.xlu0 49
    %414 = vperm.xlu0 %413, %v40
    %v415 = vpop.permute.xlu0 %414
    %417 = vrot.lane.b32.xlu0 %v40, 95
    %v418 = vpop.permute.xlu0 %417
    %vm419 = vcmask 130048
    %v420 = vsel %vm419, %v418, 0
    %422 = vmatprep.subr.mxu0 0.0
    %423 = vmatpush1.msra.mxu0 0.0
    %424 = vmatprep.subr.mxu0 0.0
    %425 = vmatpush1.msra.mxu0 0.0
    %426 = vmatprep.subr.mxu0 0.0
    %427 = vmatpush1.msra.mxu0 0.0
    %428 = vmatprep.subr.mxu0 0.0
    %429 = vmatpush1.msra.mxu0 0.0
    %430 = vmatprep.subr.mxu0 0.0
    %431 = vmatpush1.msra.mxu0 0.0
    %432 = vmatprep.subr.mxu0 0.0
    %433 = vmatpush1.msra.mxu0 0.0
    %434 = vmatprep.subr.mxu0 0.0
    %435 = vmatpush1.msra.mxu0 0.0
    %436 = vmatprep.subr.mxu0 0.0
    %437 = vmatpush1.msra.mxu0 0.0
    %438 = vmatprep.subr.mxu0 0.0
    %439 = vmatpush1.msra.mxu0 0.0
    %440 = vmatprep.subr.mxu0 0.0
    %441 = vmatpush1.msra.mxu0 0.0
    %442 = vmatprep.subr.mxu0 0.0
    %443 = vmatpush1.msra.mxu0 0.0
    %444 = vmatprep.subr.mxu0 0.0
    %445 = vmatpush1.msra.mxu0 0.0
    %446 = vmatprep.subr.mxu0 0.0
    %447 = vmatpush1.msra.mxu0 0.0
    %448 = vmatprep.subr.mxu0 0.0
    %449 = vmatpush1.msra.mxu0 0.0
    %450 = vmatprep.subr.mxu0 %v406
    %451 = vmatpush1.msra.mxu0 %v405
    %452 = vmatprep.subr.mxu0 %v398
    %453 = vmatpush1.msra.mxu0 %v397
    %454 = vmatprep.subr.mxu0 0.0
    %455 = vmatpush2.msra.mxu0 0.0
    %456 = vmatprep.subr.mxu0 0.0
    %457 = vmatpush2.msra.mxu0 0.0
    %458 = vmatprep.subr.mxu0 0.0
    %459 = vmatpush2.msra.mxu0 0.0
    %460 = vmatprep.subr.mxu0 0.0
    %461 = vmatpush2.msra.mxu0 0.0
    %462 = vmatprep.subr.mxu0 0.0
    %463 = vmatpush2.msra.mxu0 0.0
    %464 = vmatprep.subr.mxu0 0.0
    %465 = vmatpush2.msra.mxu0 0.0
    %466 = vmatprep.subr.mxu0 0.0
    %467 = vmatpush2.msra.mxu0 0.0
    %468 = vmatprep.subr.mxu0 0.0
    %469 = vmatpush2.msra.mxu0 0.0
    %470 = vmatprep.subr.mxu0 0.0
    %471 = vmatpush2.msra.mxu0 0.0
    %472 = vmatprep.subr.mxu0 0.0
    %473 = vmatpush2.msra.mxu0 0.0
    %474 = vmatprep.subr.mxu0 0.0
    %475 = vmatpush2.msra.mxu0 0.0
    %476 = vmatprep.subr.mxu0 0.0
    %477 = vmatpush2.msra.mxu0 0.0
    %478 = vmatprep.subr.mxu0 0.0
    %479 = vmatpush2.msra.mxu0 0.0
    %480 = vmatprep.subr.mxu0 0.0
    %481 = vmatpush2.msra.mxu0 0.0
    %482 = vmatprep.subr.mxu0 0.0
    %483 = vmatpush2.msra.mxu0 0.0
    %484 = vmatprep.subr.mxu0 0.0
    %485 = vmatpush2.msra.mxu0 0.0
    %486 = vmatprep.mubr.f32.mxu0 0.0
    %487 = vmatmul.mubr.f32.gmra.mxu0 %v420
    %v488 = vpop.f32.mrf.mxu0
    %v489 = vadd.f32 %v415, %v488
    %v490 = vpop.f32.mrf.mxu0
    %v491 = vadd.f32 %v415, %v490
    %492 = vdwg.mxu0
    %493 = vmatprep.subr.mxu0 0.0
    %494 = vmatpush1.msra.mxu0 0.0
    %495 = vmatprep.subr.mxu0 0.0
    %496 = vmatpush1.msra.mxu0 0.0
    %497 = vmatprep.subr.mxu0 0.0
    %498 = vmatpush1.msra.mxu0 0.0
    %499 = vmatprep.subr.mxu0 0.0
    %500 = vmatpush1.msra.mxu0 0.0
    %501 = vmatprep.subr.mxu0 0.0
    %502 = vmatpush1.msra.mxu0 0.0
    %503 = vmatprep.subr.mxu0 0.0
    %504 = vmatpush1.msra.mxu0 0.0
    %505 = vmatprep.subr.mxu0 0.0
    %506 = vmatpush1.msra.mxu0 0.0
    %507 = vmatprep.subr.mxu0 0.0
    %508 = vmatpush1.msra.mxu0 0.0
    %509 = vmatprep.subr.mxu0 0.0
    %510 = vmatpush1.msra.mxu0 0.0
    %511 = vmatprep.subr.mxu0 0.0
    %512 = vmatpush1.msra.mxu0 0.0
    %513 = vmatprep.subr.mxu0 0.0
    %514 = vmatpush1.msra.mxu0 0.0
    %515 = vmatprep.subr.mxu0 0.0
    %516 = vmatpush1.msra.mxu0 0.0
    %517 = vmatprep.subr.mxu0 0.0
    %518 = vmatpush1.msra.mxu0 0.0
    %519 = vmatprep.subr.mxu0 0.0
    %520 = vmatpush1.msra.mxu0 0.0
    %521 = vmatprep.subr.mxu0 %v408
    %522 = vmatpush1.msra.mxu0 %v407
    %523 = vmatprep.subr.mxu0 %v400
    %524 = vmatpush1.msra.mxu0 %v399
    %525 = vmatprep.subr.mxu0 0.0
    %526 = vmatpush2.msra.mxu0 0.0
    %527 = vmatprep.subr.mxu0 0.0
    %528 = vmatpush2.msra.mxu0 0.0
    %529 = vmatprep.subr.mxu0 0.0
    %530 = vmatpush2.msra.mxu0 0.0
    %531 = vmatprep.subr.mxu0 0.0
    %532 = vmatpush2.msra.mxu0 0.0
    %533 = vmatprep.subr.mxu0 0.0
    %534 = vmatpush2.msra.mxu0 0.0
    %535 = vmatprep.subr.mxu0 0.0
    %536 = vmatpush2.msra.mxu0 0.0
    %537 = vmatprep.subr.mxu0 0.0
    %538 = vmatpush2.msra.mxu0 0.0
    %539 = vmatprep.subr.mxu0 0.0
    %540 = vmatpush2.msra.mxu0 0.0
    %541 = vmatprep.subr.mxu0 0.0
    %542 = vmatpush2.msra.mxu0 0.0
    %543 = vmatprep.subr.mxu0 0.0
    %544 = vmatpush2.msra.mxu0 0.0
    %545 = vmatprep.subr.mxu0 0.0
    %546 = vmatpush2.msra.mxu0 0.0
    %547 = vmatprep.subr.mxu0 0.0
    %548 = vmatpush2.msra.mxu0 0.0
    %549 = vmatprep.subr.mxu0 0.0
    %550 = vmatpush2.msra.mxu0 0.0
    %551 = vmatprep.subr.mxu0 0.0
    %552 = vmatpush2.msra.mxu0 0.0
    %553 = vmatprep.subr.mxu0 0.0
    %554 = vmatpush2.msra.mxu0 0.0
    %555 = vmatprep.subr.mxu0 0.0
    %556 = vmatpush2.msra.mxu0 0.0
    %557 = vmatprep.mubr.f32.mxu0 0.0
    %558 = vmatmul.mubr.f32.gmra.mxu0 %v420
    %v559 = vpop.f32.mrf.mxu0
    %v560 = vadd.f32 %v415, %v559
    %v561 = vpop.f32.mrf.mxu0
    %v562 = vadd.f32 %v415, %v561
    %563 = vdwg.mxu0
    %564 = vmatprep.subr.mxu0 0.0
    %565 = vmatpush1.msra.mxu0 0.0
    %566 = vmatprep.subr.mxu0 0.0
    %567 = vmatpush1.msra.mxu0 0.0
    %568 = vmatprep.subr.mxu0 0.0
    %569 = vmatpush1.msra.mxu0 0.0
    %570 = vmatprep.subr.mxu0 0.0
    %571 = vmatpush1.msra.mxu0 0.0
    %572 = vmatprep.subr.mxu0 0.0
    %573 = vmatpush1.msra.mxu0 0.0
    %574 = vmatprep.subr.mxu0 0.0
    %575 = vmatpush1.msra.mxu0 0.0
    %576 = vmatprep.subr.mxu0 0.0
    %577 = vmatpush1.msra.mxu0 0.0
    %578 = vmatprep.subr.mxu0 0.0
    %579 = vmatpush1.msra.mxu0 0.0
    %580 = vmatprep.subr.mxu0 0.0
    %581 = vmatpush1.msra.mxu0 0.0
    %582 = vmatprep.subr.mxu0 0.0
    %583 = vmatpush1.msra.mxu0 0.0
    %584 = vmatprep.subr.mxu0 0.0
    %585 = vmatpush1.msra.mxu0 0.0
    %586 = vmatprep.subr.mxu0 0.0
    %587 = vmatpush1.msra.mxu0 0.0
    %588 = vmatprep.subr.mxu0 0.0
    %589 = vmatpush1.msra.mxu0 0.0
    %590 = vmatprep.subr.mxu0 0.0
    %591 = vmatpush1.msra.mxu0 0.0
    %592 = vmatprep.subr.mxu0 %v410
    %593 = vmatpush1.msra.mxu0 %v409
    %594 = vmatprep.subr.mxu0 %v402
    %595 = vmatpush1.msra.mxu0 %v401
    %596 = vmatprep.subr.mxu0 0.0
    %597 = vmatpush2.msra.mxu0 0.0
    %598 = vmatprep.subr.mxu0 0.0
    %599 = vmatpush2.msra.mxu0 0.0
    %600 = vmatprep.subr.mxu0 0.0
    %601 = vmatpush2.msra.mxu0 0.0
    %602 = vmatprep.subr.mxu0 0.0
    %603 = vmatpush2.msra.mxu0 0.0
    %604 = vmatprep.subr.mxu0 0.0
    %605 = vmatpush2.msra.mxu0 0.0
    %606 = vmatprep.subr.mxu0 0.0
    %607 = vmatpush2.msra.mxu0 0.0
    %608 = vmatprep.subr.mxu0 0.0
    %609 = vmatpush2.msra.mxu0 0.0
    %610 = vmatprep.subr.mxu0 0.0
    %611 = vmatpush2.msra.mxu0 0.0
    %612 = vmatprep.subr.mxu0 0.0
    %613 = vmatpush2.msra.mxu0 0.0
    %614 = vmatprep.subr.mxu0 0.0
    %615 = vmatpush2.msra.mxu0 0.0
    %616 = vmatprep.subr.mxu0 0.0
    %617 = vmatpush2.msra.mxu0 0.0
    %618 = vmatprep.subr.mxu0 0.0
    %619 = vmatpush2.msra.mxu0 0.0
    %620 = vmatprep.subr.mxu0 0.0
    %621 = vmatpush2.msra.mxu0 0.0
    %622 = vmatprep.subr.mxu0 0.0
    %623 = vmatpush2.msra.mxu0 0.0
    %624 = vmatprep.subr.mxu0 0.0
    %625 = vmatpush2.msra.mxu0 0.0
    %626 = vmatprep.subr.mxu0 0.0
    %627 = vmatpush2.msra.mxu0 0.0
    %628 = vmatprep.mubr.f32.mxu0 0.0
    %629 = vmatmul.mubr.f32.gmra.mxu0 %v420
    %v630 = vpop.f32.mrf.mxu0
    %v631 = vadd.f32 %v415, %v630
    %v632 = vpop.f32.mrf.mxu0
    %v633 = vadd.f32 %v415, %v632
    %634 = vdwg.mxu0
    %635 = vmatprep.subr.mxu0 0.0
    %636 = vmatpush1.msra.mxu0 0.0
    %637 = vmatprep.subr.mxu0 0.0
    %638 = vmatpush1.msra.mxu0 0.0
    %639 = vmatprep.subr.mxu0 0.0
    %640 = vmatpush1.msra.mxu0 0.0
    %641 = vmatprep.subr.mxu0 0.0
    %642 = vmatpush1.msra.mxu0 0.0
    %643 = vmatprep.subr.mxu0 0.0
    %644 = vmatpush1.msra.mxu0 0.0
    %645 = vmatprep.subr.mxu0 0.0
    %646 = vmatpush1.msra.mxu0 0.0
    %647 = vmatprep.subr.mxu0 0.0
    %648 = vmatpush1.msra.mxu0 0.0
    %649 = vmatprep.subr.mxu0 0.0
    %650 = vmatpush1.msra.mxu0 0.0
    %651 = vmatprep.subr.mxu0 0.0
    %652 = vmatpush1.msra.mxu0 0.0
    %653 = vmatprep.subr.mxu0 0.0
    %654 = vmatpush1.msra.mxu0 0.0
    %655 = vmatprep.subr.mxu0 0.0
    %656 = vmatpush1.msra.mxu0 0.0
    %657 = vmatprep.subr.mxu0 0.0
    %658 = vmatpush1.msra.mxu0 0.0
    %659 = vmatprep.subr.mxu0 0.0
    %660 = vmatpush1.msra.mxu0 0.0
    %661 = vmatprep.subr.mxu0 0.0
    %662 = vmatpush1.msra.mxu0 0.0
    %663 = vmatprep.subr.mxu0 %v412
    %664 = vmatpush1.msra.mxu0 %v411
    %665 = vmatprep.subr.mxu0 %v404
    %666 = vmatpush1.msra.mxu0 %v403
    %667 = vmatprep.subr.mxu0 0.0
    %668 = vmatpush2.msra.mxu0 0.0
    %669 = vmatprep.subr.mxu0 0.0
    %670 = vmatpush2.msra.mxu0 0.0
    %671 = vmatprep.subr.mxu0 0.0
    %672 = vmatpush2.msra.mxu0 0.0
    %673 = vmatprep.subr.mxu0 0.0
    %674 = vmatpush2.msra.mxu0 0.0
    %675 = vmatprep.subr.mxu0 0.0
    %676 = vmatpush2.msra.mxu0 0.0
    %677 = vmatprep.subr.mxu0 0.0
    %678 = vmatpush2.msra.mxu0 0.0
    %679 = vmatprep.subr.mxu0 0.0
    %680 = vmatpush2.msra.mxu0 0.0
    %681 = vmatprep.subr.mxu0 0.0
    %682 = vmatpush2.msra.mxu0 0.0
    %683 = vmatprep.subr.mxu0 0.0
    %684 = vmatpush2.msra.mxu0 0.0
    %685 = vmatprep.subr.mxu0 0.0
    %686 = vmatpush2.msra.mxu0 0.0
    %687 = vmatprep.subr.mxu0 0.0
    %688 = vmatpush2.msra.mxu0 0.0
    %689 = vmatprep.subr.mxu0 0.0
    %690 = vmatpush2.msra.mxu0 0.0
    %691 = vmatprep.subr.mxu0 0.0
    %692 = vmatpush2.msra.mxu0 0.0
    %693 = vmatprep.subr.mxu0 0.0
    %694 = vmatpush2.msra.mxu0 0.0
    %695 = vmatprep.subr.mxu0 0.0
    %696 = vmatpush2.msra.mxu0 0.0
    %697 = vmatprep.subr.mxu0 0.0
    %698 = vmatpush2.msra.mxu0 0.0
    %699 = vmatprep.mubr.f32.mxu0 0.0
    %700 = vmatmul.mubr.f32.gmra.mxu0 %v420
    %v701 = vpop.f32.mrf.mxu0
    %v702 = vadd.f32 %v415, %v701
    %v703 = vpop.f32.mrf.mxu0
    %v704 = vadd.f32 %v415, %v703
    %705 = vdwg.mxu0
    %v706 = vmax.f32 %v489, 0.0
    %v707 = vmax.f32 %v491, 0.0
    %v708 = vmax.f32 %v560, 0.0
    %v709 = vmax.f32 %v562, 0.0
    %v710 = vmax.f32 %v631, 0.0
    %v711 = vmax.f32 %v633, 0.0
    %v712 = vmax.f32 %v702, 0.0
    %v713 = vmax.f32 %v704, 0.0
    %714 = vset.pattern.permute.xlu0 50
    %715 = vperm.xlu0 %714, %v40
    %v716 = vpop.permute.xlu0 %715
    %v718 = vmul.f32 %v706, %v716
    %v719 = vmul.f32 %v707, %v716
    %v720 = vmul.f32 %v708, %v716
    %v721 = vmul.f32 %v709, %v716
    %v722 = vmul.f32 %v710, %v716
    %v723 = vmul.f32 %v711, %v716
    %v724 = vmul.f32 %v712, %v716
    %v725 = vmul.f32 %v713, %v716
    %v726 = vrot.slane %v718, 4
    %v727 = vadd.f32 %v718, %v726
    %v728 = vrot.slane %v727, 2
    %v729 = vadd.f32 %v727, %v728
    %v730 = vrot.slane %v729, 1
    %v731 = vadd.f32 %v729, %v730
    %v732 = vrot.slane %v719, 4
    %v733 = vadd.f32 %v719, %v732
    %v734 = vrot.slane %v733, 2
    %v735 = vadd.f32 %v733, %v734
    %v736 = vrot.slane %v735, 1
    %v737 = vadd.f32 %v735, %v736
    %v738 = vrot.slane %v720, 4
    %v739 = vadd.f32 %v720, %v738
    %v740 = vrot.slane %v739, 2
    %v741 = vadd.f32 %v739, %v740
    %v742 = vrot.slane %v741, 1
    %v743 = vadd.f32 %v741, %v742
    %v744 = vrot.slane %v721, 4
    %v745 = vadd.f32 %v721, %v744
    %v746 = vrot.slane %v745, 2
    %v747 = vadd.f32 %v745, %v746
    %v748 = vrot.slane %v747, 1
    %v749 = vadd.f32 %v747, %v748
    %v750 = vrot.slane %v722, 4
    %v751 = vadd.f32 %v722, %v750
    %v752 = vrot.slane %v751, 2
    %v753 = vadd.f32 %v751, %v752
    %v754 = vrot.slane %v753, 1
    %v755 = vadd.f32 %v753, %v754
    %v756 = vrot.slane %v723, 4
    %v757 = vadd.f32 %v723, %v756
    %v758 = vrot.slane %v757, 2
    %v759 = vadd.f32 %v757, %v758
    %v760 = vrot.slane %v759, 1
    %v761 = vadd.f32 %v759, %v760
    %v762 = vrot.slane %v724, 4
    %v763 = vadd.f32 %v724, %v762
    %v764 = vrot.slane %v763, 2
    %v765 = vadd.f32 %v763, %v764
    %v766 = vrot.slane %v765, 1
    %v767 = vadd.f32 %v765, %v766
    %v768 = vrot.slane %v725, 4
    %v769 = vadd.f32 %v725, %v768
    %v770 = vrot.slane %v769, 2
    %v771 = vadd.f32 %v769, %v770
    %v772 = vrot.slane %v771, 1
    %v773 = vadd.f32 %v771, %v772
    %774 = vset.pattern.permute.xlu0 51
    %775 = vperm.xlu0 %774, %v40
    %v776 = vpop.permute.xlu0 %775
    %v778 = vadd.f32 %v731, %v776
    %v779 = vadd.f32 %v737, %v776
    %v780 = vadd.f32 %v743, %v776
    %v781 = vadd.f32 %v749, %v776
    %v782 = vadd.f32 %v755, %v776
    %v783 = vadd.f32 %v761, %v776
    %v784 = vadd.f32 %v767, %v776
    %v785 = vadd.f32 %v773, %v776
    %v794 = vcombine.low %v778, %v779
    %v795 = vcombine.low %v780, %v781
    %v796 = vcombine.low %v782, %v783
    %v797 = vcombine.low %v784, %v785
    %v799 = vunpack.c.l.s4 1966171168
    %v800 = vunpack.c.0.s8 %v799
    %v801 = vlaneseq
    %v802 = vshrl.u32 %v801, 7
    %v803 = vsub.s32 %v800, %v802
    %v804 = vrot.slane %v794, %v803
    %v806 = vunpack.c.l.s4 1966171168
    %v807 = vunpack.c.0.s8 %v806
    %v808 = vlaneseq
    %v809 = vshrl.u32 %v808, 7
    %v810 = vsub.s32 %v807, %v809
    %v811 = vrot.slane %v795, %v810
    %v813 = vunpack.c.l.s4 1966171168
    %v814 = vunpack.c.0.s8 %v813
    %v815 = vlaneseq
    %v816 = vshrl.u32 %v815, 7
    %v817 = vsub.s32 %v814, %v816
    %v818 = vrot.slane %v796, %v817
    %v820 = vunpack.c.l.s4 1966171168
    %v821 = vunpack.c.0.s8 %v820
    %v822 = vlaneseq
    %v823 = vshrl.u32 %v822, 7
    %v824 = vsub.s32 %v821, %v823
    %v825 = vrot.slane %v797, %v824
    %v826 = vcombine.low %v804, %v811
    %v827 = vcombine.low %v818, %v825
    %v829 = vunpack.c.l.s4 1966171168
    %v830 = vunpack.c.0.s8 %v829
    %v831 = vlaneseq
    %v832 = vshrl.u32 %v831, 7
    %v833 = vsub.s32 %v830, %v832
    %v834 = vrot.slane %v826, %v833
    %v836 = vunpack.c.l.s4 1966171168
    %v837 = vunpack.c.0.s8 %v836
    %v838 = vlaneseq
    %v839 = vshrl.u32 %v838, 7
    %v840 = vsub.s32 %v837, %v839
    %v841 = vrot.slane %v827, %v840
    %v842 = vcombine.low %v834, %v841
    %844 = vst [vmem:[#allocation7] sm:$0xff] %v842
    // Predicated region
    $region18: #{tpu_custom_call.1} parent=1 // pred_check
      _
    $region19: #{tpu_custom_call.1} parent=1 // pred_check_branch
      %846 = sbr.rel (0) target = $region21
    $region20: #{tpu_custom_call.1} parent=1 // pred_region
      %s848 = ssub.s32 128, 128
      %849 = vsyncadd [#allocation4], %s848
      %s851 = sshll.u32 [#allocation7], 4
      %s852 = int_to_ptr.vmem [resolvable:$true] %s851
      %854 = dma.vmem_to_hbm [thread:$0]  %s852, 128, %s2, [#allocation4]
    $region21: #{tpu_custom_call.1} parent=1 // pred_fallthru
      _
    // Predicated region
    $region22: #{tpu_custom_call.1} parent=1 // pred_check
      _
    $region23: #{tpu_custom_call.1} parent=1 // pred_check_branch
      %856 = sbr.rel (0) target = $region25
    $region24: #{tpu_custom_call.1} parent=1 // pred_region
      %857 = dma.done [#allocation4], 128
    $region25: #{tpu_custom_call.1} parent=1 // pred_fallthru
      _
    %858 = vsyncpa [#allocation3], 1
    %859 = vsyncpa [#allocation6], 1
    %860 = vsyncpa [#allocation4], 1

</llo_original>
